<compile_context>
chip_gen: v7x
topology: tpu7x:2x2x1
jax: 0.10.0
libtpu: 0.0.40
codegen_flags: <defaults>
</compile_context>

<pallas_src>
import jax
import jax.numpy as jnp
from jax.experimental import pallas as pl
from jax.experimental.pallas import tpu as pltpu

_SUBLANE = 8  # f32 sublane granularity for the batch (second-to-last) block dim


def _round_up(x, m):
    return (x + m - 1) // m * m


def _cdiv(a, b):
    return -(-a // b)


def fcbig_kernel(x_ref, w1_ref, b1_ref, w2_ref, b2_ref, o_ref):
    # x_ref: (tb, n_in) f32, w1_ref: (n_in, h_sz) f32, b1_ref: (1, h_sz) f32,
    # w2_ref: (h_sz, n_out) f32, b2_ref: (1, n_out) f32, o_ref: (tb, n_out) f32.
    h = jnp.dot(x_ref[...], w1_ref[...],
                preferred_element_type=jnp.float32)       # MXU, f32 accumulate (Mosaic pads K)
    h = jnp.maximum(h + b1_ref[...], 0.0)                 # bias + ReLU in f32 (VPU)
    y = jnp.dot(h, w2_ref[...],
                preferred_element_type=jnp.float32)       # MXU, f32 accumulate
    o_ref[...] = (y + b2_ref[...]).astype(o_ref.dtype)    # narrow (tb, n_out) store


def _choose_tile(B, block_b):
    """Pick a batch tile (multiple of 8) and step count; prefer an even step count when >= 2
    steps so v7x's two TensorCores get balanced work along the 'parallel' batch axis."""
    tb = min(block_b, _round_up(B, _SUBLANE))
    tb = _round_up(tb, _SUBLANE)
    steps = _cdiv(B, tb)
    if steps >= 2 and steps % 2 == 1:
        tb = _round_up(_cdiv(B, steps + 1), _SUBLANE)
        steps = _cdiv(B, tb)
    return tb, steps


def fcbig_forward(x, w1, b1, w2, b2, *, block_b=1024):
    """x: (B, n_inputs) f32; w1: (n_in, h_sz); b1: (h_sz,)/(1,h_sz); w2: (h_sz, n_out); b2 likewise.
    Returns (B, n_outputs) f32 = relu(x @ w1 + b1) @ w2 + b2."""
    B, n_in = x.shape
    h_sz = w1.shape[1]
    n_out = w2.shape[1]

    x = jnp.asarray(x, jnp.float32)
    w1 = jnp.asarray(w1, jnp.float32)
    b1 = jnp.asarray(b1, jnp.float32).reshape(1, h_sz)
    w2 = jnp.asarray(w2, jnp.float32)
    b2 = jnp.asarray(b2, jnp.float32).reshape(1, n_out)

    tb, steps = _choose_tile(B, block_b)
    Bp = tb * steps

    # Only the batch dim is ever padded (zeros, n_in columns wide — cheap).  Padded rows produce
    # relu(b1) @ w2 + b2 garbage and are sliced off below; never reuse the padded output buffer.
    xp = x if Bp == B else jnp.zeros((Bp, n_in), jnp.float32).at[:B].set(x)

    # Honest scheduler hint built from the real (unpadded-feature) shapes.
    cost = pl.CostEstimate(
        flops=2 * Bp * (n_in * h_sz + h_sz * n_out),
        transcendentals=0,
        bytes_accessed=4 * (Bp * n_in + n_in * h_sz + h_sz
                            + h_sz * n_out + n_out + Bp * n_out),
    )

    out = pl.pallas_call(
        fcbig_kernel,
        out_shape=jax.ShapeDtypeStruct((Bp, n_out), jnp.float32),
        grid_spec=pltpu.PrefetchScalarGridSpec(
            num_scalar_prefetch=0,
            grid=(steps,),
            in_specs=[
                # Block last-dims equal the full array dims -> (8,128) rule satisfied, and the
                # HBM side of each DMA stays a single contiguous transfer.
                pl.BlockSpec((tb, n_in), lambda i: (i, 0)),      # x tile over batch
                pl.BlockSpec((n_in, h_sz), lambda i: (0, 0)),    # W1 (grid-invariant)
                pl.BlockSpec((1, h_sz), lambda i: (0, 0)),       # b1
                pl.BlockSpec((h_sz, n_out), lambda i: (0, 0)),   # W2 (grid-invariant)
                pl.BlockSpec((1, n_out), lambda i: (0, 0)),      # b2
            ],
            out_specs=pl.BlockSpec((tb, n_out), lambda i: (i, 0)),
        ),
        compiler_params=pltpu.CompilerParams(
            dimension_semantics=("parallel",)),   # megacore-shardable batch axis (v7x)
        cost_estimate=cost,
    )(xp, w1, b1, w2, b2)

    return out if Bp == B else out[:B]


def init_params(key, n_inputs=4, h_sz=8, n_outputs=1):
    # Deterministic init mimicking nn.Linear's U(-1/sqrt(fan_in), 1/sqrt(fan_in)).
    k1, k2, k3, k4 = jax.random.split(key, 4)
    bound1 = 1.0 / jnp.sqrt(jnp.float32(n_inputs))
    bound2 = 1.0 / jnp.sqrt(jnp.float32(h_sz))
    w1 = jax.random.uniform(k1, (n_inputs, h_sz), jnp.float32, -bound1, bound1)
    b1 = jax.random.uniform(k2, (1, h_sz), jnp.float32, -bound1, bound1)
    w2 = jax.random.uniform(k3, (h_sz, n_outputs), jnp.float32, -bound2, bound2)
    b2 = jax.random.uniform(k4, (1, n_outputs), jnp.float32, -bound2, bound2)
    return w1, b1, w2, b2


if __name__ == "__main__":
    n_inputs, h_sz, n_outputs = 4, 8, 1
    batch = 8

    key = jax.random.PRNGKey(0)
    kx, kp, kx2 = jax.random.split(key, 3)
    x = jax.random.normal(kx, (batch, n_inputs), jnp.float32)
    w1, b1, w2, b2 = init_params(kp, n_inputs, h_sz, n_outputs)

    # Small module-sized run: single grid step, no feature padding, no wrapper pad/slice ops.
    out = jax.block_until_ready(fcbig_forward(x, w1, b1, w2, b2))
    ref = jnp.maximum(x @ w1 + b1, 0.0) @ w2 + b2
    assert out.shape == (batch, n_outputs)
    assert jnp.allclose(out, ref, atol=1e-2, rtol=1e-2)

    # Larger ragged batch: multi-step grid (pipelining; even step count for v7x megacore)
    # plus zero-padded tail batch rows.
    big_batch = 1100
    xb = jax.random.normal(kx2, (big_batch, n_inputs), jnp.float32)
    out_b = jax.block_until_ready(fcbig_forward(xb, w1, b1, w2, b2))
    ref_b = jnp.maximum(xb @ w1 + b1, 0.0) @ w2 + b2
    assert out_b.shape == (big_batch, n_outputs)
    assert jnp.allclose(out_b, ref_b, atol=1e-2, rtol=1e-2)

    print("KERNEL_OK")
</pallas_src>

<mosaic_0001>
module attributes {stable_mosaic.version = 11 : i64} {
  func.func @fcbig_kernel(%arg0: i32, %arg1: memref<8x4xf32, #tpu.memory_space<vmem>>, %arg2: memref<4x8xf32, #tpu.memory_space<vmem>>, %arg3: memref<1x8xf32, #tpu.memory_space<vmem>>, %arg4: memref<8x1xf32, #tpu.memory_space<vmem>>, %arg5: memref<1x1xf32, #tpu.memory_space<vmem>>, %arg6: memref<8x1xf32, #tpu.memory_space<vmem>>) attributes {dimension_semantics = [#tpu.dimension_semantics<parallel>], iteration_bounds = array<i64: 1>, scalar_prefetch = 0 : i64, scratch_operands = 0 : i64, tpu.core_type = #tpu.core_type<tc>, window_params = [{transform_indices = @transform_0, window_bounds = array<i64: 8, 4>}, {pipeline_mode = #tpu.pipeline_mode<synchronous>, transform_indices = @transform_1, window_bounds = array<i64: 4, 8>}, {pipeline_mode = #tpu.pipeline_mode<synchronous>, transform_indices = @transform_2, window_bounds = array<i64: 1, 8>}, {pipeline_mode = #tpu.pipeline_mode<synchronous>, transform_indices = @transform_3, window_bounds = array<i64: 8, 1>}, {pipeline_mode = #tpu.pipeline_mode<synchronous>, transform_indices = @transform_4, window_bounds = array<i64: 1, 1>}, {transform_indices = @transform_5, window_bounds = array<i64: 8, 1>}]} {
    %c0 = arith.constant 0 : index
    %c0_0 = arith.constant 0 : index
    %0 = vector.load %arg1[%c0, %c0_0] : memref<8x4xf32, #tpu.memory_space<vmem>>, vector<8x4xf32>
    %c0_1 = arith.constant 0 : index
    %c0_2 = arith.constant 0 : index
    %1 = vector.load %arg2[%c0_1, %c0_2] : memref<4x8xf32, #tpu.memory_space<vmem>>, vector<4x8xf32>
    %cst = arith.constant dense<0.000000e+00> : vector<8x8xf32>
    %2 = tpu.matmul %0, %1, %cst {dimension_numbers = #tpu.dot_dimension_numbers<[1], [0], [0], [1], [0, 0, 1, 1], [], []>} : vector<8x4xf32>, vector<4x8xf32>, vector<8x8xf32> -> vector<8x8xf32>
    %c0_3 = arith.constant 0 : index
    %c0_4 = arith.constant 0 : index
    %3 = vector.load %arg3[%c0_3, %c0_4] : memref<1x8xf32, #tpu.memory_space<vmem>>, vector<1x8xf32>
    %4 = vector.broadcast %3 : vector<1x8xf32> to vector<8x8xf32>
    %5 = arith.addf %2, %4 : vector<8x8xf32>
    %cst_5 = arith.constant 0.000000e+00 : f32
    %6 = vector.broadcast %cst_5 : f32 to vector<8x8xf32>
    %7 = arith.maximumf %5, %6 : vector<8x8xf32>
    %c0_6 = arith.constant 0 : index
    %c0_7 = arith.constant 0 : index
    %8 = vector.load %arg4[%c0_6, %c0_7] : memref<8x1xf32, #tpu.memory_space<vmem>>, vector<8x1xf32>
    %cst_8 = arith.constant dense<0.000000e+00> : vector<8x1xf32>
    %9 = tpu.matmul %7, %8, %cst_8 {dimension_numbers = #tpu.dot_dimension_numbers<[1], [0], [0], [1], [0, 0, 1, 1], [], []>} : vector<8x8xf32>, vector<8x1xf32>, vector<8x1xf32> -> vector<8x1xf32>
    %c0_9 = arith.constant 0 : index
    %c0_10 = arith.constant 0 : index
    %10 = vector.load %arg5[%c0_9, %c0_10] : memref<1x1xf32, #tpu.memory_space<vmem>>, vector<1x1xf32>
    %11 = vector.broadcast %10 : vector<1x1xf32> to vector<8x1xf32>
    %12 = arith.addf %9, %11 : vector<8x1xf32>
    %c0_11 = arith.constant 0 : index
    %c0_12 = arith.constant 0 : index
    %13 = vector.load %arg6[%c0_11, %c0_12] : memref<8x1xf32, #tpu.memory_space<vmem>>, vector<8x1xf32>
    tpu.vector_store %arg6[%c0_11, %c0_12], %12 {strides = array<i32>} : memref<8x1xf32, #tpu.memory_space<vmem>>, vector<8x1xf32>,
    return
  }
  func.func @transform_0(%arg0: i32) -> (i32, i32) {
    %c0_i32 = arith.constant 0 : i32
    %c0_i32_0 = arith.constant 0 : i32
    return %arg0, %c0_i32 : i32, i32
  }
  func.func @transform_1(%arg0: i32) -> (i32, i32) {
    %c0_i32 = arith.constant 0 : i32
    %c0_i32_0 = arith.constant 0 : i32
    %c0_i32_1 = arith.constant 0 : i32
    return %c0_i32, %c0_i32_0 : i32, i32
  }
  func.func @transform_2(%arg0: i32) -> (i32, i32) {
    %c0_i32 = arith.constant 0 : i32
    %c0_i32_0 = arith.constant 0 : i32
    %c0_i32_1 = arith.constant 0 : i32
    return %c0_i32, %c0_i32_0 : i32, i32
  }
  func.func @transform_3(%arg0: i32) -> (i32, i32) {
    %c0_i32 = arith.constant 0 : i32
    %c0_i32_0 = arith.constant 0 : i32
    %c0_i32_1 = arith.constant 0 : i32
    return %c0_i32, %c0_i32_0 : i32, i32
  }
  func.func @transform_4(%arg0: i32) -> (i32, i32) {
    %c0_i32 = arith.constant 0 : i32
    %c0_i32_0 = arith.constant 0 : i32
    %c0_i32_1 = arith.constant 0 : i32
    return %c0_i32, %c0_i32_0 : i32, i32
  }
  func.func @transform_5(%arg0: i32) -> (i32, i32) {
    %c0_i32 = arith.constant 0 : i32
    %c0_i32_0 = arith.constant 0 : i32
    return %arg0, %c0_i32 : i32, i32
  }
}

</mosaic_0001>

<llo_original>
// kernel: tpu_custom_call.1
$region0: #{tpu_custom_call.1}
  #allocation0 [shape = 'u32[]', space=smem, size = 0x4, offset = 0x4, fixed_abs, tag = 'smem constant byte address 0x4 - core index']
  #allocation1 [shape = 'u32[144,128]{1,0:T(1,128)}', space=vmem, size = 0x12000, scoped, tag = 'internal scratch']
  #allocation2 [shape = 'f32[1,1]{1,0:T(1,128)S(1)}', space=vmem, size = 0x200, scoped, tag = 'scoped memory for tpu_custom_call.1']
  %s0 = inlined_call_operand.vmem [shape: f32[8,4], index: 0, kind: input, shape index: {}]
  %s1 = inlined_call_operand.vmem [shape: f32[4,8], index: 1, kind: input, shape index: {}]
  %s2 = inlined_call_operand.vmem [shape: f32[1,8], index: 2, kind: input, shape index: {}]
  %s3 = inlined_call_operand.vmem [shape: f32[8,1], index: 3, kind: input, shape index: {}]
  %s4 = inlined_call_operand.<no memory space> [shape: f32[1,1], index: 4, kind: input, shape index: {}]
  %s5 = inlined_call_operand.vmem [shape: f32[8,1], index: 5, kind: output, shape index: {}]
  %s6 = sld [smem:[#allocation0]]
  $region30: #{tpu_custom_call.1} parent=0
    _
  %s8 = ssub.s32 1, %s6
  %s9 = scalar_select 0, %s8, %s6
  %v10 = vstv %s4
  %11 = vst [vmem:[#allocation2] sm:$0x1] %v10
  // Predicated region
  $region2: #{tpu_custom_call.1} parent=0 // pred_check
    _
  $region3: #{tpu_custom_call.1} parent=0 // pred_check_branch
    %13 = sbr.rel (0) target = $region5
  $region4: #{tpu_custom_call.1} parent=0 // pred_region
    _
  $region5: #{tpu_custom_call.1} parent=0 // pred_fallthru
    _
  // Predicated region
  $region6: #{tpu_custom_call.1} parent=0 // pred_check
    _
  $region7: #{tpu_custom_call.1} parent=0 // pred_check_branch
    %15 = sbr.rel (0) target = $region9
  $region8: #{tpu_custom_call.1} parent=0 // pred_region
    _
  $region9: #{tpu_custom_call.1} parent=0 // pred_fallthru
    _
  // Predicated region
  $region10: #{tpu_custom_call.1} parent=0 // pred_check
    _
  $region11: #{tpu_custom_call.1} parent=0 // pred_check_branch
    %17 = sbr.rel (0) target = $region13
  $region12: #{tpu_custom_call.1} parent=0 // pred_region
    _
  $region13: #{tpu_custom_call.1} parent=0 // pred_fallthru
    _
  // Predicated region
  $region14: #{tpu_custom_call.1} parent=0 // pred_check
    _
  $region15: #{tpu_custom_call.1} parent=0 // pred_check_branch
    %19 = sbr.rel (0) target = $region17
  $region16: #{tpu_custom_call.1} parent=0 // pred_region
    _
  $region17: #{tpu_custom_call.1} parent=0 // pred_fallthru
    _
  // Predicated region
  $region18: #{tpu_custom_call.1} parent=0 // pred_check
    _
  $region19: #{tpu_custom_call.1} parent=0 // pred_check_branch
    %21 = sbr.rel (0) target = $region21
  $region20: #{tpu_custom_call.1} parent=0 // pred_region
    _
  $region21: #{tpu_custom_call.1} parent=0 // pred_fallthru
    _
  %v22 = vld [vmem:[%s0] sm:$0xff]
  %v23 = vld [vmem:[%s1] sm:$0xf]
  %v24 = vld [vmem:[%s2] sm:$0x1]
  %v26 = vlaneseq
  %v27 = vshrl.u32 %v26, 7
  %v28 = vsub.s32 0, %v27
  %v29 = vrot.slane %v24, %v28
  %vm31 = vcmask 31744
  %v33 = vsel %vm31, %v22, 0
  %vm35 = vcmask 1043456
  %v37 = vsel %vm35, %v23, 0
  %39 = vmatprep.subr.mxu0 0.0
  %40 = vmatpush1.msra.mxu0 %v37
  %41 = vmatprep.subr.mxu0 0.0
  %42 = vmatpush1.msra.mxu0 0.0
  %43 = vmatprep.subr.mxu0 0.0
  %44 = vmatpush1.msra.mxu0 0.0
  %45 = vmatprep.subr.mxu0 0.0
  %46 = vmatpush1.msra.mxu0 0.0
  %47 = vmatprep.subr.mxu0 0.0
  %48 = vmatpush1.msra.mxu0 0.0
  %49 = vmatprep.subr.mxu0 0.0
  %50 = vmatpush1.msra.mxu0 0.0
  %51 = vmatprep.subr.mxu0 0.0
  %52 = vmatpush1.msra.mxu0 0.0
  %53 = vmatprep.subr.mxu0 0.0
  %54 = vmatpush1.msra.mxu0 0.0
  %55 = vmatprep.subr.mxu0 0.0
  %56 = vmatpush1.msra.mxu0 0.0
  %57 = vmatprep.subr.mxu0 0.0
  %58 = vmatpush1.msra.mxu0 0.0
  %59 = vmatprep.subr.mxu0 0.0
  %60 = vmatpush1.msra.mxu0 0.0
  %61 = vmatprep.subr.mxu0 0.0
  %62 = vmatpush1.msra.mxu0 0.0
  %63 = vmatprep.subr.mxu0 0.0
  %64 = vmatpush1.msra.mxu0 0.0
  %65 = vmatprep.subr.mxu0 0.0
  %66 = vmatpush1.msra.mxu0 0.0
  %67 = vmatprep.subr.mxu0 0.0
  %68 = vmatpush1.msra.mxu0 0.0
  %69 = vmatprep.subr.mxu0 0.0
  %70 = vmatpush1.msra.mxu0 0.0
  %71 = vmatprep.subr.mxu0 0.0
  %72 = vmatpush1.msra.mxu0 0.0
  %73 = vmatprep.subr.mxu0 0.0
  %74 = vmatpush1.msra.mxu0 0.0
  %75 = vmatprep.subr.mxu0 0.0
  %76 = vmatpush1.msra.mxu0 0.0
  %77 = vmatprep.subr.mxu0 0.0
  %78 = vmatpush1.msra.mxu0 0.0
  %79 = vmatprep.subr.mxu0 0.0
  %80 = vmatpush1.msra.mxu0 0.0
  %81 = vmatprep.subr.mxu0 0.0
  %82 = vmatpush1.msra.mxu0 0.0
  %83 = vmatprep.subr.mxu0 0.0
  %84 = vmatpush1.msra.mxu0 0.0
  %85 = vmatprep.subr.mxu0 0.0
  %86 = vmatpush1.msra.mxu0 0.0
  %87 = vmatprep.subr.mxu0 0.0
  %88 = vmatpush1.msra.mxu0 0.0
  %89 = vmatprep.subr.mxu0 0.0
  %90 = vmatpush1.msra.mxu0 0.0
  %91 = vmatprep.subr.mxu0 0.0
  %92 = vmatpush1.msra.mxu0 0.0
  %93 = vmatprep.subr.mxu0 0.0
  %94 = vmatpush1.msra.mxu0 0.0
  %95 = vmatprep.subr.mxu0 0.0
  %96 = vmatpush1.msra.mxu0 0.0
  %97 = vmatprep.subr.mxu0 0.0
  %98 = vmatpush1.msra.mxu0 0.0
  %99 = vmatprep.subr.mxu0 0.0
  %100 = vmatpush1.msra.mxu0 0.0
  %101 = vmatprep.subr.mxu0 0.0
  %102 = vmatpush1.msra.mxu0 0.0
  %103 = vmatprep.mubr.f32.mxu0 0.0
  %104 = vmatmul.mubr.f32.gmra.mrb[0].mxu0 %v33
  %v105 = vpop.f32.mrb[0].mxu0
  %v106 = vadd.f32 %v29, %v105
  %v107 = vpop.f32.mrb[0].mxu0
  %108 = vdwg.mxu0
  %v109 = vmax.f32 %v106, 0.0
  %v110 = vld [vmem:[%s3] sm:$0xff]
  %v111 = vld [vmem:[#allocation2] sm:$0x1]
  %v113 = vlaneseq
  %v114 = vshrl.u32 %v113, 7
  %v115 = vsub.s32 0, %v114
  %v116 = vrot.slane %v111, %v115
  %vm118 = vcmask 64512
  %v120 = vsel %vm118, %v109, 0
  %122 = vmatprep.subr.mxu0 0.0
  %123 = vmatpush1.msra.mxu0 %v110
  %124 = vmatprep.subr.mxu0 0.0
  %125 = vmatpush1.msra.mxu0 0.0
  %126 = vmatprep.subr.mxu0 0.0
  %127 = vmatpush1.msra.mxu0 0.0
  %128 = vmatprep.subr.mxu0 0.0
  %129 = vmatpush1.msra.mxu0 0.0
  %130 = vmatprep.subr.mxu0 0.0
  %131 = vmatpush1.msra.mxu0 0.0
  %132 = vmatprep.subr.mxu0 0.0
  %133 = vmatpush1.msra.mxu0 0.0
  %134 = vmatprep.subr.mxu0 0.0
  %135 = vmatpush1.msra.mxu0 0.0
  %136 = vmatprep.subr.mxu0 0.0
  %137 = vmatpush1.msra.mxu0 0.0
  %138 = vmatprep.subr.mxu0 0.0
  %139 = vmatpush1.msra.mxu0 0.0
  %140 = vmatprep.subr.mxu0 0.0
  %141 = vmatpush1.msra.mxu0 0.0
  %142 = vmatprep.subr.mxu0 0.0
  %143 = vmatpush1.msra.mxu0 0.0
  %144 = vmatprep.subr.mxu0 0.0
  %145 = vmatpush1.msra.mxu0 0.0
  %146 = vmatprep.subr.mxu0 0.0
  %147 = vmatpush1.msra.mxu0 0.0
  %148 = vmatprep.subr.mxu0 0.0
  %149 = vmatpush1.msra.mxu0 0.0
  %150 = vmatprep.subr.mxu0 0.0
  %151 = vmatpush1.msra.mxu0 0.0
  %152 = vmatprep.subr.mxu0 0.0
  %153 = vmatpush1.msra.mxu0 0.0
  %154 = vmatprep.subr.mxu0 0.0
  %155 = vmatpush1.msra.mxu0 0.0
  %156 = vmatprep.subr.mxu0 0.0
  %157 = vmatpush1.msra.mxu0 0.0
  %158 = vmatprep.subr.mxu0 0.0
  %159 = vmatpush1.msra.mxu0 0.0
  %160 = vmatprep.subr.mxu0 0.0
  %161 = vmatpush1.msra.mxu0 0.0
  %162 = vmatprep.subr.mxu0 0.0
  %163 = vmatpush1.msra.mxu0 0.0
  %164 = vmatprep.subr.mxu0 0.0
  %165 = vmatpush1.msra.mxu0 0.0
  %166 = vmatprep.subr.mxu0 0.0
  %167 = vmatpush1.msra.mxu0 0.0
  %168 = vmatprep.subr.mxu0 0.0
  %169 = vmatpush1.msra.mxu0 0.0
  %170 = vmatprep.subr.mxu0 0.0
  %171 = vmatpush1.msra.mxu0 0.0
  %172 = vmatprep.subr.mxu0 0.0
  %173 = vmatpush1.msra.mxu0 0.0
  %174 = vmatprep.subr.mxu0 0.0
  %175 = vmatpush1.msra.mxu0 0.0
  %176 = vmatprep.subr.mxu0 0.0
  %177 = vmatpush1.msra.mxu0 0.0
  %178 = vmatprep.subr.mxu0 0.0
  %179 = vmatpush1.msra.mxu0 0.0
  %180 = vmatprep.subr.mxu0 0.0
  %181 = vmatpush1.msra.mxu0 0.0
  %182 = vmatprep.subr.mxu0 0.0
  %183 = vmatpush1.msra.mxu0 0.0
  %184 = vmatprep.subr.mxu0 0.0
  %185 = vmatpush1.msra.mxu0 0.0
  %186 = vmatprep.mubr.f32.mxu0 0.0
  %187 = vmatmul.mubr.f32.gmra.mrb[0].mxu0 %v120
  %v188 = vpop.f32.mrb[0].mxu0
  %v189 = vadd.f32 %v116, %v188
  %v190 = vpop.f32.mrb[0].mxu0
  %191 = vdwg.mxu0
  %vm192 = vcmask 7168
  %193 = vst.msk [vmem:[%s5] sm:$0xff] %vm192, %v189
  // Predicated region
  $region22: #{tpu_custom_call.1} parent=0 // pred_check
    _
  $region23: #{tpu_custom_call.1} parent=0 // pred_check_branch
    %195 = sbr.rel (0) target = $region25
  $region24: #{tpu_custom_call.1} parent=0 // pred_region
    _
  $region25: #{tpu_custom_call.1} parent=0 // pred_fallthru
    _
  // Predicated region
  $region26: #{tpu_custom_call.1} parent=0 // pred_check
    _
  $region27: #{tpu_custom_call.1} parent=0 // pred_check_branch
    %197 = sbr.rel (0) target = $region29
  $region28: #{tpu_custom_call.1} parent=0 // pred_region
    _
  $region29: #{tpu_custom_call.1} parent=0 // pred_fallthru
    _

</llo_original>
